<compile_context>
chip_gen: v7x
topology: tpu7x:2x2x1
jax: 0.10.0
libtpu: 0.0.40
codegen_flags: <defaults>
</compile_context>

<pallas_src>
import functools

import jax
import jax.numpy as jnp
from jax.experimental import pallas as pl
from jax.experimental.pallas import tpu as pltpu

_LANES = 128
_MIB = 1024 * 1024


def _inv_masep_kernel(insample_ref, inv_ref, *, freq):
    x = insample_ref[...].astype(jnp.float32)            # (B, T_i), read once
    t_i = x.shape[1]
    diff = jnp.abs(x[:, freq:] - x[:, : t_i - freq])      # static in-kernel slices
    masep = jnp.sum(diff, axis=1, keepdims=True) / jnp.float32(t_i - freq)
    inv = 1.0 / masep
    # divide_no_nan hoisted to per-series: masep==0 -> inf -> 0, masep==NaN ->
    # NaN -> 0, masep==inf -> 0 (kept).  masep >= 0 so -inf cannot occur, and
    # mask is finite, hence mask * inv == divide_no_nan(mask, masep) exactly.
    inv_ref[...] = jnp.where(jnp.isnan(inv) | (inv == jnp.inf),
                             jnp.float32(0.0), inv)


def _mase_sum_kernel(forecast_ref, target_ref, mask_ref, inv_ref,
                     out_ref, acc_ref):
    s = pl.program_id(1)

    @pl.when(s == 0)
    def _init():
        acc_ref[...] = jnp.zeros_like(acc_ref)

    f = forecast_ref[...].astype(jnp.float32)
    tg = target_ref[...].astype(jnp.float32)
    m = mask_ref[...].astype(jnp.float32)

    # divide_no_nan already folded into inv_ref (per-series reciprocal).
    acc_ref[...] += jnp.abs(tg - f) * (m * inv_ref[...])

    @pl.when(s == pl.num_programs(1) - 1)
    def _finalize():
        out_ref[...] = jnp.zeros_like(out_ref)            # lane-dense (8,128) store
        out_ref[0, 0] = jnp.sum(acc_ref[...])


def _vmem_budgets():
    """(vmem_limit_bytes, tile_budget, masep_budget, two_tensorcores)."""
    try:
        cap = pltpu.get_tpu_info().vmem_capacity_bytes
    except Exception:
        cap = 64 * _MIB                    # conservative (v7x-sized) default
    if cap >= 100 * _MIB:                  # v5e / v6e: 128 MiB physical, 1 TC
        return 64 * _MIB, 40 * _MIB, 48 * _MIB, False
    return 32 * _MIB, 12 * _MIB, 20 * _MIB, True   # v7x: 64 MiB per TC, 2 TCs


def _pick_time_tile(time_o, batch, itemsize, budget):
    """Largest lane-aligned time tile that fits VMEM and wastes little padding."""
    def fits(tt):
        # 3 double-buffered input streams + 1 persistent f32 accumulator tile.
        return (3 * 2 * itemsize + 4) * batch * tt <= budget

    for tt in (16384, 8192, 4096, 2048, 1024, 512, 256, _LANES):
        if not fits(tt):
            continue
        padded = pl.cdiv(time_o, tt) * tt
        if padded - time_o <= max(_LANES, time_o // 8):
            return tt
    # TODO(synk): tile the batch axis too when even a (B, 128) tile overflows.
    return _LANES


def mase_loss(insample, freq, forecast, target, mask):
    """MASE loss. insample: [B, T_i]; forecast/target/mask: [B, T_o]; freq: int."""
    B, T_o = forecast.shape
    T_i = insample.shape[1]
    vmem_limit, tile_budget, masep_budget, two_tc = _vmem_budgets()

    # ---- per-series scale, emitted directly as inv_masep = "1/masep or 0" ---
    if freq >= T_i:
        # Empty seasonal difference: torch yields masep = NaN -> weights 0.
        inv_masep = jnp.zeros((B, 1), jnp.float32)
    elif (2 * insample.dtype.itemsize + 12) * B * T_i <= masep_budget:
        inv_masep = pl.pallas_call(
            functools.partial(_inv_masep_kernel, freq=freq),
            out_shape=jax.ShapeDtypeStruct((B, 1), jnp.float32),
            grid=(1,),
            in_specs=[pl.BlockSpec((B, T_i), lambda i: (0, 0))],
            out_specs=pl.BlockSpec((B, 1), lambda i: (0, 0)),
            compiler_params=pltpu.CompilerParams(
                dimension_semantics=("arbitrary",),
                vmem_limit_bytes=vmem_limit),
        )(insample)
    else:
        # TODO(synk): add a T_i-tiled masep kernel (carry `freq` boundary
        # columns in scratch) for very large insample; plain XLA is fine here.
        masep = jnp.mean(
            jnp.abs(insample[:, freq:] - insample[:, : T_i - freq]
                    ).astype(jnp.float32), axis=1, keepdims=True)
        inv = 1.0 / masep
        inv_masep = jnp.where(jnp.isnan(inv) | (inv == jnp.inf), 0.0, inv)

    # ---- choose tile / pad time_o so the main loop always pipelines ---------
    tt = _pick_time_tile(T_o, B, forecast.dtype.itemsize, tile_budget)
    num_tiles = pl.cdiv(T_o, tt)
    if two_tc and num_tiles >= 3 and num_tiles % 2 == 1:
        if T_o % tt != 0:
            num_tiles += 1            # absorb the extra tile into existing padding
        elif tt >= 2 * _LANES:
            tt //= 2                  # halve the tile: even count, no extra copy
            num_tiles *= 2
    n_par = 2 if (num_tiles >= 2 and num_tiles % 2 == 0) else 1
    steps = num_tiles // n_par

    T_pad = num_tiles * tt
    if T_pad != T_o:
        pad = ((0, 0), (0, T_pad - T_o))
        forecast = jnp.pad(forecast, pad)
        target = jnp.pad(target, pad)
        mask = jnp.pad(mask, pad)     # mask == 0 on the pad keeps the loss exact

    tile_spec = pl.BlockSpec((B, tt), lambda p, s: (0, p * steps + s))
    partials = pl.pallas_call(
        _mase_sum_kernel,
        out_shape=jax.ShapeDtypeStruct((8, _LANES * n_par), jnp.float32),
        grid=(n_par, steps),
        in_specs=[tile_spec, tile_spec, tile_spec,
                  pl.BlockSpec((B, 1), lambda p, s: (0, 0))],
        out_specs=pl.BlockSpec((8, _LANES), lambda p, s: (0, p)),
        scratch_shapes=[pltpu.VMEM((B, tt), jnp.float32)],
        compiler_params=pltpu.CompilerParams(
            dimension_semantics=("parallel", "arbitrary"),
            vmem_limit_bytes=vmem_limit),
    )(forecast, target, mask, inv_masep)

    # Unwritten lanes stay zero, so a plain sum recovers the global total; the
    # mean divides by the ORIGINAL B * T_o (padding contributes exactly zero).
    return jnp.sum(partials) / jnp.float32(B * T_o)


def _ref_mase(insample, freq, forecast, target, mask):
    masep = jnp.mean(jnp.abs(insample[:, freq:] - insample[:, :-freq]), axis=1)
    w = mask / masep[:, None]
    w = jnp.where(jnp.isnan(w), 0.0, w)
    w = jnp.where(w == jnp.inf, 0.0, w)
    return jnp.mean(jnp.abs(target - forecast) * w)


if __name__ == "__main__":
    key = jax.random.PRNGKey(0)
    k1, k2, k3, k4 = jax.random.split(key, 4)

    # time_o = 192 is NOT a multiple of 128 -> exercises the padding path.
    batch, time_i, time_o, freq = 8, 32, 192, 1
    insample = jax.random.normal(k1, (batch, time_i), dtype=jnp.float32)
    # Make one series constant -> masep == 0 -> exercises divide_no_nan.
    insample = insample.at[0, :].set(1.0)
    forecast = jax.random.normal(k2, (batch, time_o), dtype=jnp.float32)
    target = jax.random.normal(k3, (batch, time_o), dtype=jnp.float32)
    mask = (jax.random.uniform(k4, (batch, time_o)) > 0.2).astype(jnp.float32)

    loss = jax.block_until_ready(mase_loss(insample, freq, forecast, target, mask))
    ref = jax.block_until_ready(_ref_mase(insample, freq, forecast, target, mask))
    assert jnp.allclose(loss, ref, rtol=1e-5, atol=1e-6), (loss, ref)

    print("KERNEL_OK")
</pallas_src>

<mosaic_0001>
module attributes {stable_mosaic.version = 11 : i64} {
  func.func @_inv_masep_kernel(%arg0: i32, %arg1: memref<8x32xf32, #tpu.memory_space<vmem>>, %arg2: memref<8x1xf32, #tpu.memory_space<vmem>>) attributes {dimension_semantics = [#tpu.dimension_semantics<arbitrary>], iteration_bounds = array<i64: 1>, scalar_prefetch = 0 : i64, scratch_operands = 0 : i64, tpu.core_type = #tpu.core_type<tc>, window_params = [{pipeline_mode = #tpu.pipeline_mode<synchronous>, transform_indices = @transform_0, window_bounds = array<i64: 8, 32>}, {pipeline_mode = #tpu.pipeline_mode<synchronous>, transform_indices = @transform_1, window_bounds = array<i64: 8, 1>}]} {
    %c0 = arith.constant 0 : index
    %c0_0 = arith.constant 0 : index
    %0 = vector.load %arg1[%c0, %c0_0] : memref<8x32xf32, #tpu.memory_space<vmem>>, vector<8x32xf32>
    %1 = vector.extract_strided_slice %0 {offsets = [0, 1], sizes = [8, 31], strides = [1, 1]} : vector<8x32xf32> to vector<8x31xf32>
    %2 = vector.extract_strided_slice %0 {offsets = [0, 0], sizes = [8, 31], strides = [1, 1]} : vector<8x32xf32> to vector<8x31xf32>
    %3 = arith.subf %1, %2 : vector<8x31xf32>
    %4 = math.absf %3 : vector<8x31xf32>
    %cst = arith.constant dense<0.000000e+00> : vector<8xf32>
    %5 = vector.multi_reduction <add>, %4, %cst [1] : vector<8x31xf32> to vector<8xf32>
    %6 = vector.shape_cast %5 : vector<8xf32> to vector<8x1xf32>
    %cst_1 = arith.constant 3.100000e+01 : f32
    %7 = vector.broadcast %cst_1 : f32 to vector<8x1xf32>
    %8 = arith.divf %6, %7 : vector<8x1xf32>
    %cst_2 = arith.constant 1.000000e+00 : f32
    %9 = vector.broadcast %cst_2 : f32 to vector<8x1xf32>
    %10 = arith.divf %9, %8 : vector<8x1xf32>
    %11 = arith.cmpf one, %10, %10 : vector<8x1xf32>
    %cst_3 = arith.constant 0x7F800000 : f32
    %12 = vector.broadcast %cst_3 : f32 to vector<8x1xf32>
    %13 = arith.cmpf oeq, %10, %12 : vector<8x1xf32>
    %14 = arith.ori %11, %13 : vector<8x1xi1>
    %cst_4 = arith.constant 0.000000e+00 : f32
    %15 = vector.broadcast %cst_4 : f32 to vector<8x1xf32>
    %16 = arith.select %14, %15, %10 : vector<8x1xi1>, vector<8x1xf32>
    %c0_5 = arith.constant 0 : index
    %c0_6 = arith.constant 0 : index
    %17 = vector.load %arg2[%c0_5, %c0_6] : memref<8x1xf32, #tpu.memory_space<vmem>>, vector<8x1xf32>
    tpu.vector_store %arg2[%c0_5, %c0_6], %16 {strides = array<i32>} : memref<8x1xf32, #tpu.memory_space<vmem>>, vector<8x1xf32>,
    return
  }
  func.func @transform_0(%arg0: i32) -> (i32, i32) {
    %c0_i32 = arith.constant 0 : i32
    %c0_i32_0 = arith.constant 0 : i32
    %c0_i32_1 = arith.constant 0 : i32
    return %c0_i32, %c0_i32_0 : i32, i32
  }
  func.func @transform_1(%arg0: i32) -> (i32, i32) {
    %c0_i32 = arith.constant 0 : i32
    %c0_i32_0 = arith.constant 0 : i32
    %c0_i32_1 = arith.constant 0 : i32
    return %c0_i32, %c0_i32_0 : i32, i32
  }
}

</mosaic_0001>

<llo_original>
// kernel: tpu_custom_call.1
$region0: #{tpu_custom_call.1}
  #allocation0 [shape = 'u32[]', space=smem, size = 0x4, offset = 0x4, fixed_abs, tag = 'smem constant byte address 0x4 - core index']
  #allocation1 [shape = 'u32[144,128]{1,0:T(1,128)}', space=vmem, size = 0x12000, scoped, tag = 'internal scratch']
  %s0 = inlined_call_operand.hbm [shape: f32[8,32], index: 0, kind: input, shape index: {}]
  %s1 = inlined_call_operand.vmem [shape: f32[8,1], index: 1, kind: output, shape index: {}]
  %s2 = sld [smem:[#allocation0]]
  $region18: #{tpu_custom_call.1} parent=0
    _
  %s4 = ssub.s32 1, %s2
  %s5 = scalar_select 0, %s4, %s2
  $region1: #{tpu_custom_call.1} parent=0
    #allocation2 [shape = 'u8[4096]{0}', space=vmem, size = 0x1000, scoped, tag = 'input window, operand 0, single buffered']
    #allocation3 [shape = 's32[1]{0}', space=sflag, size = 0x4, scoped, tag = 'scoped memory for tpu_custom_call.1']
    %6 = vsyncpa [#allocation3], 0
    // Predicated region
    $region2: #{tpu_custom_call.1} parent=1 // pred_check
      _
    $region3: #{tpu_custom_call.1} parent=1 // pred_check_branch
      %8 = sbr.rel (0) target = $region5
    $region4: #{tpu_custom_call.1} parent=1 // pred_region
      %s10 = ssub.s32 128, 128
      %11 = vsyncadd [#allocation3], %s10
      %s13 = sshll.u32 [#allocation2], 4
      %s14 = int_to_ptr.vmem [resolvable:$true] %s13
      %16 = dma.hbm_to_vmem [thread:$0]  %s0, 128, %s14, [#allocation3]
    $region5: #{tpu_custom_call.1} parent=1 // pred_fallthru
      _
    // Predicated region
    $region6: #{tpu_custom_call.1} parent=1 // pred_check
      _
    $region7: #{tpu_custom_call.1} parent=1 // pred_check_branch
      %18 = sbr.rel (0) target = $region9
    $region8: #{tpu_custom_call.1} parent=1 // pred_region
      %19 = dma.done [#allocation3], 128
    $region9: #{tpu_custom_call.1} parent=1 // pred_fallthru
      _
    %v20 = vld [vmem:[#allocation2] sm:$0xff]
    %22 = vrot.lane.b32.xlu0 %v20, 1
    %v23 = vpop.permute.xlu0 %22
    %v25 = vsub.f32 %v20, %v23
    %v26 = vand.u32 2147483647, %v25
    %28 = vrot.lane.b32.xlu0 %v26, 127
    %v29 = vpop.permute.xlu0 %28
    %vm31 = vcmask 252928
    %v32 = vsel %vm31, %v29, 0.0
    %33 = vadd.xlane.f32.xlu0 %v32
    %v34 = vpop.xlane.xlu0 %33
    %v35 = vrcp.pop 31.0
    %v36 = vmul.f32 %v34, %v35
    %v37 = vrcp.pop %v36
    %v38 = vmul.f32 1.0, %v37
    %vm39 = vcmp.ne.f32.partialorder %v38, %v38
    %vm40 = vcmp.eq.f32.partialorder %v38, inf
    %vm41 = vmor %vm39, %vm40
    %v42 = vsel %vm41, 0.0, %v38
    %vm43 = vcmask 7168
    %44 = vst.msk [vmem:[%s1] sm:$0xff] %vm43, %v42
    // Predicated region
    $region10: #{tpu_custom_call.1} parent=1 // pred_check
      _
    $region11: #{tpu_custom_call.1} parent=1 // pred_check_branch
      %46 = sbr.rel (0) target = $region13
    $region12: #{tpu_custom_call.1} parent=1 // pred_region
      _
    $region13: #{tpu_custom_call.1} parent=1 // pred_fallthru
      _
    // Predicated region
    $region14: #{tpu_custom_call.1} parent=1 // pred_check
      _
    $region15: #{tpu_custom_call.1} parent=1 // pred_check_branch
      %48 = sbr.rel (0) target = $region17
    $region16: #{tpu_custom_call.1} parent=1 // pred_region
      _
    $region17: #{tpu_custom_call.1} parent=1 // pred_fallthru
      _
    %49 = vsyncpa [#allocation3], 1

</llo_original>
